<compile_context>
chip_gen: v7x
topology: tpu7x:2x2x1
jax: 0.10.0
libtpu: 0.0.40
codegen_flags: <defaults>
</compile_context>

<pallas_src>
import functools

import jax
import jax.numpy as jnp
from jax.experimental import pallas as pl
from jax.experimental.pallas import tpu as pltpu


def _make_net_kernel(num_layers: int):
    """Builds kernel(x_ref, w0_ref, ..., w{L-1}_ref, out_ref) on a (d, TN) tile."""

    def kernel(x_ref, *refs):
        w_refs = refs[:-1]
        out_ref = refs[-1]
        assert len(w_refs) == num_layers

        h = x_ref[...]  # (d, TN) bf16
        # All layers except the last: matmul (bf16 in, f32 acc) + ReLU.
        for li in range(num_layers - 1):
            acc = jnp.dot(w_refs[li][...], h,
                          preferred_element_type=jnp.float32)
            acc = jnp.maximum(acc, 0.0)          # ReLU in f32 (v5e-safe)
            h = acc.astype(jnp.bfloat16)          # back to bf16 MXU path
        # Final layer: no activation, store f32, lane-dense (TN multiple of 128).
        out = jnp.dot(w_refs[-1][...], h, preferred_element_type=jnp.float32)
        out_ref[...] = out.astype(out_ref.dtype)

    return kernel


@functools.partial(jax.jit, static_argnames=("block_n", "vmem_limit_bytes"))
def net_forward(x, weights, *, block_n=128, vmem_limit_bytes=32 * 1024 * 1024):
    """x: (d, N); weights: list of (out_features, in_features). Returns (c, N) f32."""
    d, n = x.shape
    c = weights[-1].shape[0]
    num_layers = len(weights)

    # bf16 inputs, f32 accumulation.
    xb = x.astype(jnp.bfloat16)
    wbs = [w.astype(jnp.bfloat16) for w in weights]

    # Pad N up to a multiple of block_n so every tile is lane-dense.
    n_pad = block_n * pl.cdiv(n, block_n)
    if n_pad != n:
        xb = jnp.pad(xb, ((0, 0), (0, n_pad - n)))

    grid = (n_pad // block_n,)
    kernel = _make_net_kernel(num_layers)

    # Scheduler hint.
    flops = sum(2 * n_pad * w.shape[0] * w.shape[1] for w in weights)
    bytes_accessed = (xb.size * 2
                      + sum(w.size * 2 for w in wbs)
                      + c * n_pad * 4)

    in_specs = [pl.BlockSpec((d, block_n), lambda i: (0, i))]
    # Weights: constant block index -> fetched once, VMEM-resident across grid.
    for w in wbs:
        in_specs.append(pl.BlockSpec(w.shape, lambda i: (0, 0)))

    out = pl.pallas_call(
        kernel,
        out_shape=jax.ShapeDtypeStruct((c, n_pad), jnp.float32),
        grid=grid,
        in_specs=in_specs,
        out_specs=pl.BlockSpec((c, block_n), lambda i: (0, i)),
        compiler_params=pltpu.CompilerParams(
            dimension_semantics=("parallel",),
            vmem_limit_bytes=vmem_limit_bytes,
        ),
        cost_estimate=pl.CostEstimate(
            flops=flops, transcendentals=0, bytes_accessed=bytes_accessed),
    )(xb, *wbs)

    return out[:, :n] if n_pad != n else out


def init_weights(key, num_hidden_layers, r, c, d):
    """Deterministic init matching nn.Linear shapes (out, in), bias=False."""
    shapes = [(r, d)] + [(r, r)] * num_hidden_layers + [(c, r)]
    keys = jax.random.split(key, len(shapes))
    weights = []
    for k, (fan_out, fan_in) in zip(keys, shapes):
        bound = 1.0 / jnp.sqrt(fan_in)  # torch.nn.Linear default bound
        weights.append(
            jax.random.uniform(k, (fan_out, fan_in), jnp.float32, -bound, bound)
        )
    return weights


def reference_forward_f32(x, weights):
    """Pure-JAX f32 mirror of the PyTorch forward."""
    out = x.T                                   # (N, d)
    for w in weights[:-1]:
        out = jnp.maximum(out @ w.T, 0.0)
    out = out @ weights[-1].T                   # (N, c)
    return out.T                                # (c, N)


def reference_forward_bf16(x, weights):
    """Reference mirroring the kernel's bf16-input / f32-accumulate precision."""
    f32 = jnp.float32
    h = x.astype(jnp.bfloat16).astype(f32)      # (d, N)
    for w in weights[:-1]:
        acc = jnp.dot(w.astype(jnp.bfloat16).astype(f32), h)
        h = jnp.maximum(acc, 0.0).astype(jnp.bfloat16).astype(f32)
    return jnp.dot(weights[-1].astype(jnp.bfloat16).astype(f32), h)   # (c, N)


if __name__ == "__main__":
    # Small shapes consistent with the module (d, r, c); batch deliberately not
    # a multiple of 128 to exercise the lane-padding path.
    num_hidden_layers = 2
    d, r, c = 128, 64, 10
    batch = 200

    key = jax.random.PRNGKey(0)
    k_x, k_w = jax.random.split(key)

    x = jax.random.normal(k_x, (d, batch), jnp.float32)   # (d, N) as in PyTorch call
    weights = init_weights(k_w, num_hidden_layers, r, c, d)

    out = net_forward(x, weights)
    out = jax.block_until_ready(out)

    assert out.shape == (c, batch), out.shape

    # Tight check vs a reference that mirrors the kernel's bf16/f32 precision.
    ref_bf16 = reference_forward_bf16(x, weights)
    assert jnp.allclose(out, ref_bf16, atol=2e-3, rtol=2e-3), "mismatch vs bf16 reference"

    # Loose check vs the exact f32 PyTorch-style forward (bf16 input quantization).
    ref_f32 = reference_forward_f32(x, weights)
    assert jnp.allclose(out, ref_f32, atol=5e-2, rtol=5e-2), "mismatch vs f32 reference"

    print("KERNEL_OK")
</pallas_src>

<mosaic_0001>
module attributes {stable_mosaic.version = 11 : i64} {
  func.func @kernel(%arg0: i32, %arg1: memref<128x128xbf16, #tpu.memory_space<vmem>>, %arg2: memref<64x128xbf16, #tpu.memory_space<vmem>>, %arg3: memref<64x64xbf16, #tpu.memory_space<vmem>>, %arg4: memref<64x64xbf16, #tpu.memory_space<vmem>>, %arg5: memref<10x64xbf16, #tpu.memory_space<vmem>>, %arg6: memref<10x128xf32, #tpu.memory_space<vmem>>) attributes {dimension_semantics = [#tpu.dimension_semantics<parallel>], iteration_bounds = array<i64: 2>, scalar_prefetch = 0 : i64, scratch_operands = 0 : i64, tpu.core_type = #tpu.core_type<tc>, window_params = [{transform_indices = @transform_0, window_bounds = array<i64: 128, 128>}, {pipeline_mode = #tpu.pipeline_mode<synchronous>, transform_indices = @transform_1, window_bounds = array<i64: 64, 128>}, {pipeline_mode = #tpu.pipeline_mode<synchronous>, transform_indices = @transform_2, window_bounds = array<i64: 64, 64>}, {pipeline_mode = #tpu.pipeline_mode<synchronous>, transform_indices = @transform_3, window_bounds = array<i64: 64, 64>}, {pipeline_mode = #tpu.pipeline_mode<synchronous>, transform_indices = @transform_4, window_bounds = array<i64: 10, 64>}, {transform_indices = @transform_5, window_bounds = array<i64: 10, 128>}]} {
    %c0 = arith.constant 0 : index
    %c0_0 = arith.constant 0 : index
    %0 = vector.load %arg1[%c0, %c0_0] : memref<128x128xbf16, #tpu.memory_space<vmem>>, vector<128x128xbf16>
    %c0_1 = arith.constant 0 : index
    %c0_2 = arith.constant 0 : index
    %1 = vector.load %arg2[%c0_1, %c0_2] : memref<64x128xbf16, #tpu.memory_space<vmem>>, vector<64x128xbf16>
    %cst = arith.constant dense<0.000000e+00> : vector<64x128xf32>
    %2 = tpu.matmul %1, %0, %cst {dimension_numbers = #tpu.dot_dimension_numbers<[1], [0], [0], [1], [0, 0, 1, 1], [], []>} : vector<64x128xbf16>, vector<128x128xbf16>, vector<64x128xf32> -> vector<64x128xf32>
    %cst_3 = arith.constant 0.000000e+00 : f32
    %3 = vector.broadcast %cst_3 : f32 to vector<64x128xf32>
    %4 = arith.maximumf %2, %3 : vector<64x128xf32>
    %5 = arith.truncf %4 : vector<64x128xf32> to vector<64x128xbf16>
    %c0_4 = arith.constant 0 : index
    %c0_5 = arith.constant 0 : index
    %6 = vector.load %arg3[%c0_4, %c0_5] : memref<64x64xbf16, #tpu.memory_space<vmem>>, vector<64x64xbf16>
    %cst_6 = arith.constant dense<0.000000e+00> : vector<64x128xf32>
    %7 = tpu.matmul %6, %5, %cst_6 {dimension_numbers = #tpu.dot_dimension_numbers<[1], [0], [0], [1], [0, 0, 1, 1], [], []>} : vector<64x64xbf16>, vector<64x128xbf16>, vector<64x128xf32> -> vector<64x128xf32>
    %cst_7 = arith.constant 0.000000e+00 : f32
    %8 = vector.broadcast %cst_7 : f32 to vector<64x128xf32>
    %9 = arith.maximumf %7, %8 : vector<64x128xf32>
    %10 = arith.truncf %9 : vector<64x128xf32> to vector<64x128xbf16>
    %c0_8 = arith.constant 0 : index
    %c0_9 = arith.constant 0 : index
    %11 = vector.load %arg4[%c0_8, %c0_9] : memref<64x64xbf16, #tpu.memory_space<vmem>>, vector<64x64xbf16>
    %cst_10 = arith.constant dense<0.000000e+00> : vector<64x128xf32>
    %12 = tpu.matmul %11, %10, %cst_10 {dimension_numbers = #tpu.dot_dimension_numbers<[1], [0], [0], [1], [0, 0, 1, 1], [], []>} : vector<64x64xbf16>, vector<64x128xbf16>, vector<64x128xf32> -> vector<64x128xf32>
    %cst_11 = arith.constant 0.000000e+00 : f32
    %13 = vector.broadcast %cst_11 : f32 to vector<64x128xf32>
    %14 = arith.maximumf %12, %13 : vector<64x128xf32>
    %15 = arith.truncf %14 : vector<64x128xf32> to vector<64x128xbf16>
    %c0_12 = arith.constant 0 : index
    %c0_13 = arith.constant 0 : index
    %16 = vector.load %arg5[%c0_12, %c0_13] : memref<10x64xbf16, #tpu.memory_space<vmem>>, vector<10x64xbf16>
    %cst_14 = arith.constant dense<0.000000e+00> : vector<10x128xf32>
    %17 = tpu.matmul %16, %15, %cst_14 {dimension_numbers = #tpu.dot_dimension_numbers<[1], [0], [0], [1], [0, 0, 1, 1], [], []>} : vector<10x64xbf16>, vector<64x128xbf16>, vector<10x128xf32> -> vector<10x128xf32>
    %c0_15 = arith.constant 0 : index
    %c0_16 = arith.constant 0 : index
    %18 = vector.load %arg6[%c0_15, %c0_16] : memref<10x128xf32, #tpu.memory_space<vmem>>, vector<10x128xf32>
    tpu.vector_store %arg6[%c0_15, %c0_16], %17 {strides = array<i32>} : memref<10x128xf32, #tpu.memory_space<vmem>>, vector<10x128xf32>,
    return
  }
  func.func @transform_0(%arg0: i32) -> (i32, i32) {
    %c0_i32 = arith.constant 0 : i32
    %c0_i32_0 = arith.constant 0 : i32
    return %c0_i32, %arg0 : i32, i32
  }
  func.func @transform_1(%arg0: i32) -> (i32, i32) {
    %c0_i32 = arith.constant 0 : i32
    %c0_i32_0 = arith.constant 0 : i32
    %c0_i32_1 = arith.constant 0 : i32
    return %c0_i32, %c0_i32_0 : i32, i32
  }
  func.func @transform_2(%arg0: i32) -> (i32, i32) {
    %c0_i32 = arith.constant 0 : i32
    %c0_i32_0 = arith.constant 0 : i32
    %c0_i32_1 = arith.constant 0 : i32
    return %c0_i32, %c0_i32_0 : i32, i32
  }
  func.func @transform_3(%arg0: i32) -> (i32, i32) {
    %c0_i32 = arith.constant 0 : i32
    %c0_i32_0 = arith.constant 0 : i32
    %c0_i32_1 = arith.constant 0 : i32
    return %c0_i32, %c0_i32_0 : i32, i32
  }
  func.func @transform_4(%arg0: i32) -> (i32, i32) {
    %c0_i32 = arith.constant 0 : i32
    %c0_i32_0 = arith.constant 0 : i32
    %c0_i32_1 = arith.constant 0 : i32
    return %c0_i32, %c0_i32_0 : i32, i32
  }
  func.func @transform_5(%arg0: i32) -> (i32, i32) {
    %c0_i32 = arith.constant 0 : i32
    %c0_i32_0 = arith.constant 0 : i32
    return %c0_i32, %arg0 : i32, i32
  }
}

</mosaic_0001>

<llo_original>
// kernel: net_forward.1
$region0: #{net_forward.1}
  #allocation0 [shape = 'u32[]', space=smem, size = 0x4, offset = 0x4, fixed_abs, tag = 'smem constant byte address 0x4 - core index']
  #allocation1 [shape = 'u32[144,128]{1,0:T(1,128)}', space=vmem, size = 0x12000, scoped, tag = 'internal scratch']
  %s0 = inlined_call_operand.vmem [shape: bf16[128,256], index: 0, kind: input, shape index: {}]
  %s1 = inlined_call_operand.vmem [shape: bf16[64,128], index: 1, kind: input, shape index: {}]
  %s2 = inlined_call_operand.vmem [shape: bf16[64,64], index: 2, kind: input, shape index: {}]
  %s3 = inlined_call_operand.vmem [shape: bf16[64,64], index: 3, kind: input, shape index: {}]
  %s4 = inlined_call_operand.vmem [shape: bf16[10,64], index: 4, kind: input, shape index: {}]
  %s5 = inlined_call_operand.hbm [shape: f32[10,256], index: 5, kind: output, shape index: {}]
  %s6 = sld [smem:[#allocation0]]
  $region94: #{net_forward.1} parent=0
    _
  %s8 = ssub.s32 1, %s6
  %s9 = scalar_select 0, %s8, %s6
  $region1: #{net_forward.1} parent=0
    #allocation2 [shape = 'u8[65536]{0}', space=vmem, size = 0x10000, scoped, tag = 'input window, operand 0']
    #allocation3 [shape = 'u8[16384]{0}', space=vmem, size = 0x4000, scoped, tag = 'output window, operand 0']
    #allocation4 [shape = 's32[2]{0}', space=sflag, size = 0x8, scoped, tag = 'scoped memory for net_forward.1']
    %10 = vsyncpa [#allocation4], 0
    %s11 = scalar_lea.sflag [#allocation4], 1
    %12 = vsyncpa %s11, 0
    loop: start=0, step=1, limit=4
    $region2: #{net_forward.1} parent=1 // loop_pre_header
      _
    $region3: #{net_forward.1} parent=1 // loop_header
      %s14 = sphi 0, %s18
      %p15 = scmp.ge.s32.totalorder %s14, 4
      %s24 = sphi 0, %s26
      %s27 = sphi 0, %s24
      %s28 = sphi 0, %s27
      %s44 = sphi 0, %s28
      %s48 = sphi 0, %s48
      %s50 = sphi 0, %s48
      %s51 = sphi 0, %s50
      %s65 = sphi 0, %s51
      %s69 = sphi 0, %s69
      %s71 = sphi 0, %s69
      %s72 = sphi 0, %s71
      %s86 = sphi 0, %s72
      %s90 = sphi 0, %s90
      %s92 = sphi 0, %s90
      %s93 = sphi 0, %s92
      %s107 = sphi 0, %s93
      %s111 = sphi 0, %s111
      %s113 = sphi 0, %s111
      %s114 = sphi 0, %s113
      %s128 = sphi 0, %s114
      %s134 = sphi 0, %s136
      %s137 = sphi 0, %s134
      %s138 = sphi 0, %s137
      %s154 = sphi 0, %s138
    $region4: #{net_forward.1} parent=1 // loop_header_branch
      %17 = sbr.rel (%p15) target = $region8
    $region5: #{net_forward.1} parent=1 // loop_body
      %s19 = ssub.s32 %s14, 1
      %s20 = ssub.s32 %s14, 2
      %s21 = sadd.s32 %s14, 1
      %s22 = ssub.s32 %s14, %s21
      %p23 = scmp.eq.s32.totalorder %s22, 0
      %s25 = sadd.s32 %s24, 1
      %s26 = scalar_select %p23, %s24, %s25
      %p29 = pneg %p23
      %p30 = scmp.eq.s32.totalorder %s14, 1
      %p31 = por %p29, %p30
      %p32 = scmp.ne.s32.totalorder %s24, %s27
      %p33 = scmp.eq.s32.totalorder %s14, 0
      %p34 = por %p32, %p33
      %p35 = scmp.ne.s32.totalorder %s24, %s27
      %p36 = scmp.eq.s32.totalorder %s19, 1
      %p37 = por %p35, %p36
      %p38 = scmp.ne.s32.totalorder %s27, %s28
      %p39 = scmp.eq.s32.totalorder %s19, 0
      %p40 = por %p38, %p39
      %p41 = scmp.ne.s32.totalorder %s27, %s28
      %p42 = scmp.eq.s32.totalorder %s20, 1
      %p43 = por %p41, %p42
      %p45 = scmp.ne.s32.totalorder %s28, %s44
      %p46 = scmp.eq.s32.totalorder %s20, 0
      %p47 = por %p45, %p46
      %s49 = sadd.s32 %s48, 1
      %p52 = scmp.eq.s32.totalorder %s14, 1
      %p53 = scmp.ne.s32.totalorder %s48, %s50
      %p54 = scmp.eq.s32.totalorder %s14, 0
      %p55 = por %p53, %p54
      %p56 = scmp.ne.s32.totalorder %s48, %s50
      %p57 = scmp.eq.s32.totalorder %s19, 1
      %p58 = por %p56, %p57
      %p59 = scmp.ne.s32.totalorder %s50, %s51
      %p60 = scmp.eq.s32.totalorder %s19, 0
      %p61 = por %p59, %p60
      %p62 = scmp.ne.s32.totalorder %s50, %s51
      %p63 = scmp.eq.s32.totalorder %s20, 1
      %p64 = por %p62, %p63
      %p66 = scmp.ne.s32.totalorder %s51, %s65
      %p67 = scmp.eq.s32.totalorder %s20, 0
      %p68 = por %p66, %p67
      %s70 = sadd.s32 %s69, 1
      %p73 = scmp.eq.s32.totalorder %s14, 1
      %p74 = scmp.ne.s32.totalorder %s69, %s71
      %p75 = scmp.eq.s32.totalorder %s14, 0
      %p76 = por %p74, %p75
      %p77 = scmp.ne.s32.totalorder %s69, %s71
      %p78 = scmp.eq.s32.totalorder %s19, 1
      %p79 = por %p77, %p78
      %p80 = scmp.ne.s32.totalorder %s71, %s72
      %p81 = scmp.eq.s32.totalorder %s19, 0
      %p82 = por %p80, %p81
      %p83 = scmp.ne.s32.totalorder %s71, %s72
      %p84 = scmp.eq.s32.totalorder %s20, 1
      %p85 = por %p83, %p84
      %p87 = scmp.ne.s32.totalorder %s72, %s86
      %p88 = scmp.eq.s32.totalorder %s20, 0
      %p89 = por %p87, %p88
      %s91 = sadd.s32 %s90, 1
      %p94 = scmp.eq.s32.totalorder %s14, 1
      %p95 = scmp.ne.s32.totalorder %s90, %s92
      %p96 = scmp.eq.s32.totalorder %s14, 0
      %p97 = por %p95, %p96
      %p98 = scmp.ne.s32.totalorder %s90, %s92
      %p99 = scmp.eq.s32.totalorder %s19, 1
      %p100 = por %p98, %p99
      %p101 = scmp.ne.s32.totalorder %s92, %s93
      %p102 = scmp.eq.s32.totalorder %s19, 0
      %p103 = por %p101, %p102
      %p104 = scmp.ne.s32.totalorder %s92, %s93
      %p105 = scmp.eq.s32.totalorder %s20, 1
      %p106 = por %p104, %p105
      %p108 = scmp.ne.s32.totalorder %s93, %s107
      %p109 = scmp.eq.s32.totalorder %s20, 0
      %p110 = por %p108, %p109
      %s112 = sadd.s32 %s111, 1
      %p115 = scmp.eq.s32.totalorder %s14, 1
      %p116 = scmp.ne.s32.totalorder %s111, %s113
      %p117 = scmp.eq.s32.totalorder %s14, 0
      %p118 = por %p116, %p117
      %p119 = scmp.ne.s32.totalorder %s111, %s113
      %p120 = scmp.eq.s32.totalorder %s19, 1
      %p121 = por %p119, %p120
      %p122 = scmp.ne.s32.totalorder %s113, %s114
      %p123 = scmp.eq.s32.totalorder %s19, 0
      %p124 = por %p122, %p123
      %p125 = scmp.ne.s32.totalorder %s113, %s114
      %p126 = scmp.eq.s32.totalorder %s20, 1
      %p127 = por %p125, %p126
      %p129 = scmp.ne.s32.totalorder %s114, %s128
      %p130 = scmp.eq.s32.totalorder %s20, 0
      %p131 = por %p129, %p130
      %s132 = ssub.s32 %s14, %s21
      %p133 = scmp.eq.s32.totalorder %s132, 0
      %s135 = sadd.s32 %s134, 1
      %s136 = scalar_select %p133, %s134, %s135
      %p139 = pneg %p133
      %p140 = scmp.eq.s32.totalorder %s14, 1
      %p141 = por %p139, %p140
      %p142 = scmp.ne.s32.totalorder %s134, %s137
      %p143 = scmp.eq.s32.totalorder %s14, 0
      %p144 = por %p142, %p143
      %p145 = scmp.ne.s32.totalorder %s134, %s137
      %p146 = scmp.eq.s32.totalorder %s19, 1
      %p147 = por %p145, %p146
      %p148 = scmp.ne.s32.totalorder %s137, %s138
      %p149 = scmp.eq.s32.totalorder %s19, 0
      %p150 = por %p148, %p149
      %p151 = scmp.ne.s32.totalorder %s137, %s138
      %p152 = scmp.eq.s32.totalorder %s20, 1
      %p153 = por %p151, %p152
      %p155 = scmp.ne.s32.totalorder %s138, %s154
      %p156 = scmp.eq.s32.totalorder %s20, 0
      %p157 = por %p155, %p156
      %p158 = scmp.le.s32.totalorder 1, %s14
      %p159 = scmp.lt.s32.totalorder %s14, 3
      %p160 = pnand %p158, %p159
      %p161 = pneg %p160
      // Predicated region
      $region9: #{net_forward.1} parent=5 // pred_check
        _
      $region10: #{net_forward.1} parent=5 // pred_check_branch
        %163 = sbr.rel (%p160) target = $region12
      $region11: #{net_forward.1} parent=5 // pred_region
        %s164 = ssub.s32 %s14, 1
        // Predicated region
        $region13: #{net_forward.1} parent=11 // pred_check
          %p165 = pneg %p61
        $region14: #{net_forward.1} parent=11 // pred_check_branch
          %167 = sbr.rel (%p165) target = $region16
        $region15: #{net_forward.1} parent=11 // pred_region
          _
        $region16: #{net_forward.1} parent=11 // pred_fallthru
          _
        // Predicated region
        $region17: #{net_forward.1} parent=11 // pred_check
          %p168 = pneg %p82
        $region18: #{net_forward.1} parent=11 // pred_check_branch
          %170 = sbr.rel (%p168) target = $region20
        $region19: #{net_forward.1} parent=11 // pred_region
          _
        $region20: #{net_forward.1} parent=11 // pred_fallthru
          _
        // Predicated region
        $region21: #{net_forward.1} parent=11 // pred_check
          %p171 = pneg %p103
        $region22: #{net_forward.1} parent=11 // pred_check_branch
          %173 = sbr.rel (%p171) target = $region24
        $region23: #{net_forward.1} parent=11 // pred_region
          _
        $region24: #{net_forward.1} parent=11 // pred_fallthru
          _
        // Predicated region
        $region25: #{net_forward.1} parent=11 // pred_check
          %p174 = pneg %p124
        $region26: #{net_forward.1} parent=11 // pred_check_branch
          %176 = sbr.rel (%p174) target = $region28
        $region27: #{net_forward.1} parent=11 // pred_region
          _
        $region28: #{net_forward.1} parent=11 // pred_fallthru
          _
      $region12: #{net_forward.1} parent=5 // pred_fallthru
        _
      %p177 = scmp.lt.s32.totalorder %s14, 2
      // Predicated region
      $region29: #{net_forward.1} parent=5 // pred_check
        %p178 = pneg %p177
      $region30: #{net_forward.1} parent=5 // pred_check_branch
        %180 = sbr.rel (%p178) target = $region32
      $region31: #{net_forward.1} parent=5 // pred_region
        // Predicated region
        $region33: #{net_forward.1} parent=31 // pred_check
          %p181 = pneg %p34
        $region34: #{net_forward.1} parent=31 // pred_check_branch
          %183 = sbr.rel (%p181) target = $region36
        $region35: #{net_forward.1} parent=31 // pred_region
          %s184 = sand.u32 %s24, 1
          %s185 = sand.u32 %s24, 1
          %s186 = smul.addr %s185, 64
          %s187 = scalar_lea.vmem [#allocation2], %s186
          %s188 = smul.addr %s14, 4
          %s189 = scalar_lea.vmem %s0, %s188
          // Predicated region
          $region37: #{net_forward.1} parent=35 // pred_check
            _
          $region38: #{net_forward.1} parent=35 // pred_check_branch
            %191 = sbr.rel (0) target = $region40
          $region39: #{net_forward.1} parent=35 // pred_region
            // Predicated region
            $region41: #{net_forward.1} parent=39 // pred_check
              _
            $region42: #{net_forward.1} parent=39 // pred_check_branch
              %193 = sbr.rel target = $region44
            $region43: #{net_forward.1} parent=39 // pred_region
              // Predicated region
              $region56: #{net_forward.1} parent=43 // pred_check
                _
              $region57: #{net_forward.1} parent=43 // pred_check_branch
                %238 = sbr.rel (0) target = $region59
              $region58: #{net_forward.1} parent=43 // pred_region
                loop: start=0, step=1, limit=1
                $region60: #{net_forward.1} parent=58 // loop_pre_header
                  _
                $region61: #{net_forward.1} parent=58 // loop_header
                  %s240 = sphi 0, %s244
                  %p241 = scmp.ge.s32.totalorder %s240, 1
                  %s245 = sphi %s189, %s189
                  %s246 = sphi %s187, %s187
                $region62: #{net_forward.1} parent=58 // loop_header_branch
                  %243 = sbr.rel (%p241) target = $region66
                $region63: #{net_forward.1} parent=58 // loop_body
                  _
                $region64: #{net_forward.1} parent=58 // loop_footer
                  %s244 = sadd.s32 1, %s240
                $region65: #{net_forward.1} parent=58 // loop_footer_branch
                  %239 = sbr.rel target = $region61
                $region66: #{net_forward.1} parent=58 // loop_exit
                  _
                loop: start=0, step=1, limit=1
                $region67: #{net_forward.1} parent=58 // loop_pre_header
                  _
                $region68: #{net_forward.1} parent=58 // loop_header
                  %s249 = sphi 0, %s253
                  %p250 = scmp.ge.s32.totalorder %s249, 1
                  %s254 = sphi %s189, %s189
                  %s255 = sphi %s187, %s187
                $region69: #{net_forward.1} parent=58 // loop_header_branch
                  %252 = sbr.rel (%p250) target = $region73
                $region70: #{net_forward.1} parent=58 // loop_body
                  %v256 = vld [vmem:[%s254] sm:$0xf]
                  %257 = vst [vmem:[%s255] sm:$0xf] %v256
                  %v258 = vld [vmem:[%s254 + $0x8] sm:$0xf]
                  %259 = vst [vmem:[%s255 + $0x4] sm:$0xf] %v258
                  %v260 = vld [vmem:[%s254 + $0x10] sm:$0xf]
                  %261 = vst [vmem:[%s255 + $0x8] sm:$0xf] %v260
                  %v262 = vld [vmem:[%s254 + $0x18] sm:$0xf]
                  %263 = vst [vmem:[%s255 + $0xc] sm:$0xf] %v262
                  %v264 = vld [vmem:[%s254 + $0x20] sm:$0xf]
                  %265 = vst [vmem:[%s255 + $0x10] sm:$0xf] %v264
                  %v266 = vld [vmem:[%s254 + $0x28] sm:$0xf]
                  %267 = vst [vmem:[%s255 + $0x14] sm:$0xf] %v266
                  %v268 = vld [vmem:[%s254 + $0x30] sm:$0xf]
                  %269 = vst [vmem:[%s255 + $0x18] sm:$0xf] %v268
                  %v270 = vld [vmem:[%s254 + $0x38] sm:$0xf]
                  %271 = vst [vmem:[%s255 + $0x1c] sm:$0xf] %v270
                  %v272 = vld [vmem:[%s254 + $0x40] sm:$0xf]
                  %273 = vst [vmem:[%s255 + $0x20] sm:$0xf] %v272
                  %v274 = vld [vmem:[%s254 + $0x48] sm:$0xf]
                  %275 = vst [vmem:[%s255 + $0x24] sm:$0xf] %v274
                  %v276 = vld [vmem:[%s254 + $0x50] sm:$0xf]
                  %277 = vst [vmem:[%s255 + $0x28] sm:$0xf] %v276
                  %v278 = vld [vmem:[%s254 + $0x58] sm:$0xf]
                  %279 = vst [vmem:[%s255 + $0x2c] sm:$0xf] %v278
                  %v280 = vld [vmem:[%s254 + $0x60] sm:$0xf]
                  %281 = vst [vmem:[%s255 + $0x30] sm:$0xf] %v280
                  %v282 = vld [vmem:[%s254 + $0x68] sm:$0xf]
                  %283 = vst [vmem:[%s255 + $0x34] sm:$0xf] %v282
                  %v284 = vld [vmem:[%s254 + $0x70] sm:$0xf]
                  %285 = vst [vmem:[%s255 + $0x38] sm:$0xf] %v284
                  %v286 = vld [vmem:[%s254 + $0x78] sm:$0xf]
                  %287 = vst [vmem:[%s255 + $0x3c] sm:$0xf] %v286
                $region71: #{net_forward.1} parent=58 // loop_footer
                  %s253 = sadd.s32 1, %s249
                $region72: #{net_forward.1} parent=58 // loop_footer_branch
                  %248 = sbr.rel target = $region68
                $region73: #{net_forward.1} parent=58 // loop_exit
                  _
              $region59: #{net_forward.1} parent=43 // pred_fallthru
                _
            $region44: #{net_forward.1} parent=39 // pred_fallthru
              _
            // Predicated region
            $region45: #{net_forward.1} parent=39 // pred_check
              _
            $region46: #{net_forward.1} parent=39 // pred_check_branch
              %195 = sbr.rel (0) target = $region48
            $region47: #{net_forward.1} parent=39 // pred_region
              loop: start=0, step=1, limit=1
              $region49: #{net_forward.1} parent=47 // loop_pre_header
                _
              $region50: #{net_forward.1} parent=47 // loop_header
                %s198 = sphi 0, %s202
                %p199 = scmp.ge.s32.totalorder %s198, 1
                %s203 = sphi %s189, %s189
                %s204 = sphi %s187, %s187
              $region51: #{net_forward.1} parent=47 // loop_header_branch
                %201 = sbr.rel (%p199) target = $region55
              $region52: #{net_forward.1} parent=47 // loop_body
                %v205 = vld [vmem:[%s203] sm:$0xf]
                %206 = vst [vmem:[%s204] sm:$0xf] %v205
                %v207 = vld [vmem:[%s203 + $0x8] sm:$0xf]
                %208 = vst [vmem:[%s204 + $0x4] sm:$0xf] %v207
                %v209 = vld [vmem:[%s203 + $0x10] sm:$0xf]
                %210 = vst [vmem:[%s204 + $0x8] sm:$0xf] %v209
                %v211 = vld [vmem:[%s203 + $0x18] sm:$0xf]
                %212 = vst [vmem:[%s204 + $0xc] sm:$0xf] %v211
                %v213 = vld [vmem:[%s203 + $0x20] sm:$0xf]
                %214 = vst [vmem:[%s204 + $0x10] sm:$0xf] %v213
                %v215 = vld [vmem:[%s203 + $0x28] sm:$0xf]
                %216 = vst [vmem:[%s204 + $0x14] sm:$0xf] %v215
                %v217 = vld [vmem:[%s203 + $0x30] sm:$0xf]
                %218 = vst [vmem:[%s204 + $0x18] sm:$0xf] %v217
                %v219 = vld [vmem:[%s203 + $0x38] sm:$0xf]
                %220 = vst [vmem:[%s204 + $0x1c] sm:$0xf] %v219
                %v221 = vld [vmem:[%s203 + $0x40] sm:$0xf]
                %222 = vst [vmem:[%s204 + $0x20] sm:$0xf] %v221
                %v223 = vld [vmem:[%s203 + $0x48] sm:$0xf]
                %224 = vst [vmem:[%s204 + $0x24] sm:$0xf] %v223
                %v225 = vld [vmem:[%s203 + $0x50] sm:$0xf]
                %226 = vst [vmem:[%s204 + $0x28] sm:$0xf] %v225
                %v227 = vld [vmem:[%s203 + $0x58] sm:$0xf]
                %228 = vst [vmem:[%s204 + $0x2c] sm:$0xf] %v227
                %v229 = vld [vmem:[%s203 + $0x60] sm:$0xf]
                %230 = vst [vmem:[%s204 + $0x30] sm:$0xf] %v229
                %v231 = vld [vmem:[%s203 + $0x68] sm:$0xf]
                %232 = vst [vmem:[%s204 + $0x34] sm:$0xf] %v231
                %v233 = vld [vmem:[%s203 + $0x70] sm:$0xf]
                %234 = vst [vmem:[%s204 + $0x38] sm:$0xf] %v233
                %v235 = vld [vmem:[%s203 + $0x78] sm:$0xf]
                %236 = vst [vmem:[%s204 + $0x3c] sm:$0xf] %v235
              $region53: #{net_forward.1} parent=47 // loop_footer
                %s202 = sadd.s32 1, %s198
              $region54: #{net_forward.1} parent=47 // loop_footer_branch
                %197 = sbr.rel target = $region50
              $region55: #{net_forward.1} parent=47 // loop_exit
                _
            $region48: #{net_forward.1} parent=39 // pred_fallthru
              _
          $region40: #{net_forward.1} parent=35 // pred_fallthru
            _
          %288 = vnop
        $region36: #{net_forward.1} parent=31 // pred_fallthru
          _
      $region32: #{net_forward.1} parent=5 // pred_fallthru
        _
      %p289 = scmp.le.s32.totalorder 1, %s14
      %p290 = scmp.lt.s32.totalorder %s14, 3
      %p291 = pnand %p289, %p290
      %p292 = pneg %p291
      // Predicated region
      $region74: #{net_forward.1} parent=5 // pred_check
        _
      $region75: #{net_forward.1} parent=5 // pred_check_branch
        %294 = sbr.rel (%p291) target = $region77
      $region76: #{net_forward.1} parent=5 // pred_region
        %s295 = ssub.s32 %s14, 1
        %s296 = sand.u32 %s27, 1
        %s297 = sand.u32 %s27, 1
        %s298 = smul.addr %s297, 64
        %s299 = scalar_lea.vmem [#allocation2], %s298
        // Predicated region
        $region78: #{net_forward.1} parent=76 // pred_check
          %p300 = pneg %p40
        $region79: #{net_forward.1} parent=76 // pred_check_branch
          %302 = sbr.rel (%p300) target = $region81
        $region80: #{net_forward.1} parent=76 // pred_region
          _
        $region81: #{net_forward.1} parent=76 // pred_fallthru
          _
        %s303 = sand.u32 %s27, 1
        %s304 = sand.u32 %s27, 1
        %s305 = smul.addr %s304, 64
        %s306 = scalar_lea.vmem [#allocation2], %s305
        %p307 = pneg %p40
        %p308 = pneg %p37
        %p309 = pneg %p61
        %p310 = pneg %p58
        %p311 = pneg %p82
        %p312 = pneg %p79
        %p313 = pneg %p103
        %p314 = pneg %p100
        %p315 = pneg %p124
        %p316 = pneg %p121
        %p317 = pneg %p150
        %p318 = pneg %p147
        %s319 = sand.u32 %s137, 1
        %s320 = scalar_lea.sflag [#allocation4], %s319
        %s321 = sand.u32 %s137, 1
        %s322 = smul.addr %s321, 16
        %s323 = scalar_lea.vmem [#allocation3], %s322
        %v325 = vld [vmem:[%s299] sm:$0xf]
        %v326 = vld [vmem:[%s299 + $0x4] sm:$0xf]
        %v327 = vld [vmem:[%s299 + $0x8] sm:$0xf]
        %v328 = vld [vmem:[%s299 + $0xc] sm:$0xf]
        %v329 = vld [vmem:[%s299 + $0x10] sm:$0xf]
        %v330 = vld [vmem:[%s299 + $0x14] sm:$0xf]
        %v331 = vld [vmem:[%s299 + $0x18] sm:$0xf]
        %v332 = vld [vmem:[%s299 + $0x1c] sm:$0xf]
        %v333 = vld [vmem:[%s299 + $0x20] sm:$0xf]
        %v334 = vld [vmem:[%s299 + $0x24] sm:$0xf]
        %v335 = vld [vmem:[%s299 + $0x28] sm:$0xf]
        %v336 = vld [vmem:[%s299 + $0x2c] sm:$0xf]
        %v337 = vld [vmem:[%s299 + $0x30] sm:$0xf]
        %v338 = vld [vmem:[%s299 + $0x34] sm:$0xf]
        %v339 = vld [vmem:[%s299 + $0x38] sm:$0xf]
        %v340 = vld [vmem:[%s299 + $0x3c] sm:$0xf]
        %v341 = vld [vmem:[%s1] sm:$0xf]
        %v342 = vld [vmem:[%s1 + $0x4] sm:$0xf]
        %v343 = vld [vmem:[%s1 + $0x8] sm:$0xf]
        %v344 = vld [vmem:[%s1 + $0xc] sm:$0xf]
        %v345 = vld [vmem:[%s1 + $0x10] sm:$0xf]
        %v346 = vld [vmem:[%s1 + $0x14] sm:$0xf]
        %v347 = vld [vmem:[%s1 + $0x18] sm:$0xf]
        %v348 = vld [vmem:[%s1 + $0x1c] sm:$0xf]
        %v357 = vunpack.c.l.b16 %v341
        %v358 = vunpack.c.l.b16 %v342
        %v359 = vunpack.c.l.b16 %v343
        %v360 = vunpack.c.l.b16 %v344
        %v361 = vunpack.c.l.b16 %v345
        %v362 = vunpack.c.l.b16 %v346
        %v363 = vunpack.c.l.b16 %v347
        %v364 = vunpack.c.l.b16 %v348
        %v365 = vpack.c.b16 %v358, %v357
        %v366 = vpack.c.b16 %v360, %v359
        %v367 = vpack.c.b16 %v362, %v361
        %v368 = vpack.c.b16 %v364, %v363
        %v389 = vunpack.c.l.b16 %v325
        %v390 = vunpack.c.l.b16 %v326
        %v391 = vunpack.c.l.b16 %v327
        %v392 = vunpack.c.l.b16 %v328
        %v393 = vunpack.c.l.b16 %v329
        %v394 = vunpack.c.l.b16 %v330
        %v395 = vunpack.c.l.b16 %v331
        %v396 = vunpack.c.l.b16 %v332
        %v397 = vunpack.c.l.b16 %v333
        %v398 = vunpack.c.l.b16 %v334
        %v399 = vunpack.c.l.b16 %v335
        %v400 = vunpack.c.l.b16 %v336
        %v401 = vunpack.c.l.b16 %v337
        %v402 = vunpack.c.l.b16 %v338
        %v403 = vunpack.c.l.b16 %v339
        %v404 = vunpack.c.l.b16 %v340
        %v405 = vpack.c.b16 %v390, %v389
        %v406 = vpack.c.b16 %v392, %v391
        %v407 = vpack.c.b16 %v394, %v393
        %v408 = vpack.c.b16 %v396, %v395
        %v409 = vpack.c.b16 %v398, %v397
        %v410 = vpack.c.b16 %v400, %v399
        %v411 = vpack.c.b16 %v402, %v401
        %v412 = vpack.c.b16 %v404, %v403
        %421 = vmatprep.subr.bf16.mxu0 0
        %422 = vmatpush1.bf16.msra.mxu0 %v405
        %423 = vmatprep.subr.bf16.mxu0 0
        %424 = vmatpush1.bf16.msra.mxu0 %v406
        %425 = vmatprep.subr.bf16.mxu0 0
        %426 = vmatpush1.bf16.msra.mxu0 %v407
        %427 = vmatprep.subr.bf16.mxu0 0
        %428 = vmatpush1.bf16.msra.mxu0 %v408
        %429 = vmatprep.subr.bf16.mxu0 0
        %430 = vmatpush1.bf16.msra.mxu0 %v409
        %431 = vmatprep.subr.bf16.mxu0 0
        %432 = vmatpush1.bf16.msra.mxu0 %v410
        %433 = vmatprep.subr.bf16.mxu0 0
        %434 = vmatpush1.bf16.msra.mxu0 %v411
        %435 = vmatprep.subr.bf16.mxu0 0
        %436 = vmatpush1.bf16.msra.mxu0 %v412
        %437 = vmatprep.subr.bf16.mxu0 0
        %438 = vmatpush1.bf16.msra.mxu0 0
        %439 = vmatprep.subr.bf16.mxu0 0
        %440 = vmatpush1.bf16.msra.mxu0 0
        %441 = vmatprep.subr.bf16.mxu0 0
        %442 = vmatpush1.bf16.msra.mxu0 0
        %443 = vmatprep.subr.bf16.mxu0 0
        %444 = vmatpush1.bf16.msra.mxu0 0
        %445 = vmatprep.subr.bf16.mxu0 0
        %446 = vmatpush1.bf16.msra.mxu0 0
        %447 = vmatprep.subr.bf16.mxu0 0
        %448 = vmatpush1.bf16.msra.mxu0 0
        %449 = vmatprep.subr.bf16.mxu0 0
        %450 = vmatpush1.bf16.msra.mxu0 0
        %451 = vmatprep.subr.bf16.mxu0 0
        %452 = vmatpush1.bf16.msra.mxu0 0
        %453 = vmatprep.mubr.bf16.mxu0 0
        %454 = vmatmul.mubr.bf16.gmra.mrb[0].mxu0 %v365
        %v455 = vpop.f32.mrb[0].mxu0
        %v456 = vadd.f32 0.0, %v455
        %v457 = vpop.f32.mrb[0].mxu0
        %v458 = vpop.f32.mrb[0].mxu0
        %v459 = vadd.f32 0.0, %v458
        %v460 = vpop.f32.mrb[0].mxu0
        %461 = vmatprep.mubr.bf16.mxu0 0
        %462 = vmatmul.mubr.bf16.gmra.mrb[0].mxu0 %v366
        %v463 = vpop.f32.mrb[0].mxu0
        %v464 = vadd.f32 0.0, %v463
        %v465 = vpop.f32.mrb[0].mxu0
        %v466 = vpop.f32.mrb[0].mxu0
        %v467 = vadd.f32 0.0, %v466
        %v468 = vpop.f32.mrb[0].mxu0
        %469 = vmatprep.mubr.bf16.mxu0 0
        %470 = vmatmul.mubr.bf16.gmra.mrb[0].mxu0 %v367
        %v471 = vpop.f32.mrb[0].mxu0
        %v472 = vadd.f32 0.0, %v471
        %v473 = vpop.f32.mrb[0].mxu0
        %v474 = vpop.f32.mrb[0].mxu0
        %v475 = vadd.f32 0.0, %v474
        %v476 = vpop.f32.mrb[0].mxu0
        %477 = vmatprep.mubr.bf16.mxu0 0
        %478 = vmatmul.mubr.bf16.gmra.mrb[0].mxu0 %v368
        %v479 = vpop.f32.mrb[0].mxu0
        %v480 = vadd.f32 0.0, %v479
        %v481 = vpop.f32.mrb[0].mxu0
        %v482 = vpop.f32.mrb[0].mxu0
        %v483 = vadd.f32 0.0, %v482
        %v484 = vpop.f32.mrb[0].mxu0
        %485 = vdwg.mxu0
        %v486 = vmax.f32 %v456, 0.0
        %v487 = vmax.f32 %v459, 0.0
        %v488 = vmax.f32 %v464, 0.0
        %v489 = vmax.f32 %v467, 0.0
        %v490 = vmax.f32 %v472, 0.0
        %v491 = vmax.f32 %v475, 0.0
        %v492 = vmax.f32 %v480, 0.0
        %v493 = vmax.f32 %v483, 0.0
        %v494 = vpack.c.bf16 %v487, %v486
        %v495 = vpack.c.bf16 %v489, %v488
        %v496 = vpack.c.bf16 %v491, %v490
        %v497 = vpack.c.bf16 %v493, %v492
        %v498 = vld [vmem:[%s2] sm:$0xf]
        %v499 = vld [vmem:[%s2 + $0x4] sm:$0xf]
        %v500 = vld [vmem:[%s2 + $0x8] sm:$0xf]
        %v501 = vld [vmem:[%s2 + $0xc] sm:$0xf]
        %v502 = vld [vmem:[%s2 + $0x10] sm:$0xf]
        %v503 = vld [vmem:[%s2 + $0x14] sm:$0xf]
        %v504 = vld [vmem:[%s2 + $0x18] sm:$0xf]
        %v505 = vld [vmem:[%s2 + $0x1c] sm:$0xf]
        %v514 = vunpack.c.l.b16 %v498
        %v515 = vunpack.c.l.b16 %v499
        %v516 = vunpack.c.l.b16 %v500
        %v517 = vunpack.c.l.b16 %v501
        %v518 = vunpack.c.l.b16 %v502
        %v519 = vunpack.c.l.b16 %v503
        %v520 = vunpack.c.l.b16 %v504
        %v521 = vunpack.c.l.b16 %v505
        %v522 = vpack.c.b16 %v515, %v514
        %v523 = vpack.c.b16 %v517, %v516
        %v524 = vpack.c.b16 %v519, %v518
        %v525 = vpack.c.b16 %v521, %v520
        %vm526 = vcmask 523264
        %v528 = vsel %vm526, %v522, 0
        %v531 = vsel %vm526, %v523, 0
        %v534 = vsel %vm526, %v524, 0
        %v537 = vsel %vm526, %v525, 0
        %539 = vmatprep.subr.bf16.mxu0 0
        %540 = vmatpush1.bf16.msra.mxu0 %v494
        %541 = vmatprep.subr.bf16.mxu0 0
        %542 = vmatpush1.bf16.msra.mxu0 %v495
        %543 = vmatprep.subr.bf16.mxu0 0
        %544 = vmatpush1.bf16.msra.mxu0 %v496
        %545 = vmatprep.subr.bf16.mxu0 0
        %546 = vmatpush1.bf16.msra.mxu0 %v497
        %547 = vmatprep.subr.bf16.mxu0 0
        %548 = vmatpush1.bf16.msra.mxu0 0
        %549 = vmatprep.subr.bf16.mxu0 0
        %550 = vmatpush1.bf16.msra.mxu0 0
        %551 = vmatprep.subr.bf16.mxu0 0
        %552 = vmatpush1.bf16.msra.mxu0 0
        %553 = vmatprep.subr.bf16.mxu0 0
        %554 = vmatpush1.bf16.msra.mxu0 0
        %555 = vmatprep.subr.bf16.mxu0 0
        %556 = vmatpush1.bf16.msra.mxu0 0
        %557 = vmatprep.subr.bf16.mxu0 0
        %558 = vmatpush1.bf16.msra.mxu0 0
        %559 = vmatprep.subr.bf16.mxu0 0
        %560 = vmatpush1.bf16.msra.mxu0 0
        %561 = vmatprep.subr.bf16.mxu0 0
        %562 = vmatpush1.bf16.msra.mxu0 0
        %563 = vmatprep.subr.bf16.mxu0 0
        %564 = vmatpush1.bf16.msra.mxu0 0
        %565 = vmatprep.subr.bf16.mxu0 0
        %566 = vmatpush1.bf16.msra.mxu0 0
        %567 = vmatprep.subr.bf16.mxu0 0
        %568 = vmatpush1.bf16.msra.mxu0 0
        %569 = vmatprep.subr.bf16.mxu0 0
        %570 = vmatpush1.bf16.msra.mxu0 0
        %571 = vmatprep.mubr.bf16.mxu0 0
        %572 = vmatmul.mubr.bf16.gmra.mrb[0].mxu0 %v528
        %v573 = vpop.f32.mrb[0].mxu0
        %v574 = vadd.f32 0.0, %v573
        %v575 = vpop.f32.mrb[0].mxu0
        %v576 = vpop.f32.mrb[0].mxu0
        %v577 = vadd.f32 0.0, %v576
        %v578 = vpop.f32.mrb[0].mxu0
        %579 = vmatprep.mubr.bf16.mxu0 0
        %580 = vmatmul.mubr.bf16.gmra.mrb[0].mxu0 %v531
        %v581 = vpop.f32.mrb[0].mxu0
        %v582 = vadd.f32 0.0, %v581
        %v583 = vpop.f32.mrb[0].mxu0
        %v584 = vpop.f32.mrb[0].mxu0
        %v585 = vadd.f32 0.0, %v584
        %v586 = vpop.f32.mrb[0].mxu0
        %587 = vmatprep.mubr.bf16.mxu0 0
        %588 = vmatmul.mubr.bf16.gmra.mrb[0].mxu0 %v534
        %v589 = vpop.f32.mrb[0].mxu0
        %v590 = vadd.f32 0.0, %v589
        %v591 = vpop.f32.mrb[0].mxu0
        %v592 = vpop.f32.mrb[0].mxu0
        %v593 = vadd.f32 0.0, %v592
        %v594 = vpop.f32.mrb[0].mxu0
        %595 = vmatprep.mubr.bf16.mxu0 0
        %596 = vmatmul.mubr.bf16.gmra.mrb[0].mxu0 %v537
        %v597 = vpop.f32.mrb[0].mxu0
        %v598 = vadd.f32 0.0, %v597
        %v599 = vpop.f32.mrb[0].mxu0
        %v600 = vpop.f32.mrb[0].mxu0
        %v601 = vadd.f32 0.0, %v600
        %v602 = vpop.f32.mrb[0].mxu0
        %603 = vdwg.mxu0
        %v604 = vmax.f32 %v574, 0.0
        %v605 = vmax.f32 %v577, 0.0
        %v606 = vmax.f32 %v582, 0.0
        %v607 = vmax.f32 %v585, 0.0
        %v608 = vmax.f32 %v590, 0.0
        %v609 = vmax.f32 %v593, 0.0
        %v610 = vmax.f32 %v598, 0.0
        %v611 = vmax.f32 %v601, 0.0
        %v612 = vpack.c.bf16 %v605, %v604
        %v613 = vpack.c.bf16 %v607, %v606
        %v614 = vpack.c.bf16 %v609, %v608
        %v615 = vpack.c.bf16 %v611, %v610
        %v616 = vld [vmem:[%s3] sm:$0xf]
        %v617 = vld [vmem:[%s3 + $0x4] sm:$0xf]
        %v618 = vld [vmem:[%s3 + $0x8] sm:$0xf]
        %v619 = vld [vmem:[%s3 + $0xc] sm:$0xf]
        %v620 = vld [vmem:[%s3 + $0x10] sm:$0xf]
        %v621 = vld [vmem:[%s3 + $0x14] sm:$0xf]
        %v622 = vld [vmem:[%s3 + $0x18] sm:$0xf]
        %v623 = vld [vmem:[%s3 + $0x1c] sm:$0xf]
        %v632 = vunpack.c.l.b16 %v616
        %v633 = vunpack.c.l.b16 %v617
        %v634 = vunpack.c.l.b16 %v618
        %v635 = vunpack.c.l.b16 %v619
        %v636 = vunpack.c.l.b16 %v620
        %v637 = vunpack.c.l.b16 %v621
        %v638 = vunpack.c.l.b16 %v622
        %v639 = vunpack.c.l.b16 %v623
        %v640 = vpack.c.b16 %v633, %v632
        %v641 = vpack.c.b16 %v635, %v634
        %v642 = vpack.c.b16 %v637, %v636
        %v643 = vpack.c.b16 %v639, %v638
        %v645 = vsel %vm526, %v640, 0
        %v648 = vsel %vm526, %v641, 0
        %v651 = vsel %vm526, %v642, 0
        %v654 = vsel %vm526, %v643, 0
        %656 = vmatprep.subr.bf16.mxu0 0
        %657 = vmatpush1.bf16.msra.mxu0 %v612
        %658 = vmatprep.subr.bf16.mxu0 0
        %659 = vmatpush1.bf16.msra.mxu0 %v613
        %660 = vmatprep.subr.bf16.mxu0 0
        %661 = vmatpush1.bf16.msra.mxu0 %v614
        %662 = vmatprep.subr.bf16.mxu0 0
        %663 = vmatpush1.bf16.msra.mxu0 %v615
        %664 = vmatprep.subr.bf16.mxu0 0
        %665 = vmatpush1.bf16.msra.mxu0 0
        %666 = vmatprep.subr.bf16.mxu0 0
        %667 = vmatpush1.bf16.msra.mxu0 0
        %668 = vmatprep.subr.bf16.mxu0 0
        %669 = vmatpush1.bf16.msra.mxu0 0
        %670 = vmatprep.subr.bf16.mxu0 0
        %671 = vmatpush1.bf16.msra.mxu0 0
        %672 = vmatprep.subr.bf16.mxu0 0
        %673 = vmatpush1.bf16.msra.mxu0 0
        %674 = vmatprep.subr.bf16.mxu0 0
        %675 = vmatpush1.bf16.msra.mxu0 0
        %676 = vmatprep.subr.bf16.mxu0 0
        %677 = vmatpush1.bf16.msra.mxu0 0
        %678 = vmatprep.subr.bf16.mxu0 0
        %679 = vmatpush1.bf16.msra.mxu0 0
        %680 = vmatprep.subr.bf16.mxu0 0
        %681 = vmatpush1.bf16.msra.mxu0 0
        %682 = vmatprep.subr.bf16.mxu0 0
        %683 = vmatpush1.bf16.msra.mxu0 0
        %684 = vmatprep.subr.bf16.mxu0 0
        %685 = vmatpush1.bf16.msra.mxu0 0
        %686 = vmatprep.subr.bf16.mxu0 0
        %687 = vmatpush1.bf16.msra.mxu0 0
        %688 = vmatprep.mubr.bf16.mxu0 0
        %689 = vmatmul.mubr.bf16.gmra.mrb[0].mxu0 %v645
        %v690 = vpop.f32.mrb[0].mxu0
        %v691 = vadd.f32 0.0, %v690
        %v692 = vpop.f32.mrb[0].mxu0
        %v693 = vpop.f32.mrb[0].mxu0
        %v694 = vadd.f32 0.0, %v693
        %v695 = vpop.f32.mrb[0].mxu0
        %696 = vmatprep.mubr.bf16.mxu0 0
        %697 = vmatmul.mubr.bf16.gmra.mrb[0].mxu0 %v648
        %v698 = vpop.f32.mrb[0].mxu0
        %v699 = vadd.f32 0.0, %v698
        %v700 = vpop.f32.mrb[0].mxu0
        %v701 = vpop.f32.mrb[0].mxu0
        %v702 = vadd.f32 0.0, %v701
        %v703 = vpop.f32.mrb[0].mxu0
        %704 = vmatprep.mubr.bf16.mxu0 0
        %705 = vmatmul.mubr.bf16.gmra.mrb[0].mxu0 %v651
        %v706 = vpop.f32.mrb[0].mxu0
        %v707 = vadd.f32 0.0, %v706
        %v708 = vpop.f32.mrb[0].mxu0
        %v709 = vpop.f32.mrb[0].mxu0
        %v710 = vadd.f32 0.0, %v709
        %v711 = vpop.f32.mrb[0].mxu0
        %712 = vmatprep.mubr.bf16.mxu0 0
        %713 = vmatmul.mubr.bf16.gmra.mrb[0].mxu0 %v654
        %v714 = vpop.f32.mrb[0].mxu0
        %v715 = vadd.f32 0.0, %v714
        %v716 = vpop.f32.mrb[0].mxu0
        %v717 = vpop.f32.mrb[0].mxu0
        %v718 = vadd.f32 0.0, %v717
        %v719 = vpop.f32.mrb[0].mxu0
        %720 = vdwg.mxu0
        %v721 = vmax.f32 %v691, 0.0
        %v722 = vmax.f32 %v694, 0.0
        %v723 = vmax.f32 %v699, 0.0
        %v724 = vmax.f32 %v702, 0.0
        %v725 = vmax.f32 %v707, 0.0
        %v726 = vmax.f32 %v710, 0.0
        %v727 = vmax.f32 %v715, 0.0
        %v728 = vmax.f32 %v718, 0.0
        %v729 = vpack.c.bf16 %v722, %v721
        %v730 = vpack.c.bf16 %v724, %v723
        %v731 = vpack.c.bf16 %v726, %v725
        %v732 = vpack.c.bf16 %v728, %v727
        %v733 = vld [vmem:[%s4] sm:$0xf]
        %v734 = vld [vmem:[%s4 + $0x4] sm:$0x1]
        %v737 = vunpack.c.l.b16 %v733
        %v738 = vunpack.c.l.b16 %v734
        %v739 = vpack.c.b16 %v738, %v737
        %v741 = vsel %vm526, %v739, 0
        %743 = vmatprep.subr.bf16.mxu0 0
        %744 = vmatpush1.bf16.msra.mxu0 %v729
        %745 = vmatprep.subr.bf16.mxu0 0
        %746 = vmatpush1.bf16.msra.mxu0 %v730
        %747 = vmatprep.subr.bf16.mxu0 0
        %748 = vmatpush1.bf16.msra.mxu0 %v731
        %749 = vmatprep.subr.bf16.mxu0 0
        %750 = vmatpush1.bf16.msra.mxu0 %v732
        %751 = vmatprep.subr.bf16.mxu0 0
        %752 = vmatpush1.bf16.msra.mxu0 0
        %753 = vmatprep.subr.bf16.mxu0 0
        %754 = vmatpush1.bf16.msra.mxu0 0
        %755 = vmatprep.subr.bf16.mxu0 0
        %756 = vmatpush1.bf16.msra.mxu0 0
        %757 = vmatprep.subr.bf16.mxu0 0
        %758 = vmatpush1.bf16.msra.mxu0 0
        %759 = vmatprep.subr.bf16.mxu0 0
        %760 = vmatpush1.bf16.msra.mxu0 0
        %761 = vmatprep.subr.bf16.mxu0 0
        %762 = vmatpush1.bf16.msra.mxu0 0
        %763 = vmatprep.subr.bf16.mxu0 0
        %764 = vmatpush1.bf16.msra.mxu0 0
        %765 = vmatprep.subr.bf16.mxu0 0
        %766 = vmatpush1.bf16.msra.mxu0 0
        %767 = vmatprep.subr.bf16.mxu0 0
        %768 = vmatpush1.bf16.msra.mxu0 0
        %769 = vmatprep.subr.bf16.mxu0 0
        %770 = vmatpush1.bf16.msra.mxu0 0
        %771 = vmatprep.subr.bf16.mxu0 0
        %772 = vmatpush1.bf16.msra.mxu0 0
        %773 = vmatprep.subr.bf16.mxu0 0
        %774 = vmatpush1.bf16.msra.mxu0 0
        %775 = vmatprep.mubr.bf16.mxu0 0
        %776 = vmatmul.mubr.bf16.gmra.mrb[0].mxu0 %v741
        %v777 = vpop.f32.mrb[0].mxu0
        %v778 = vadd.f32 0.0, %v777
        %v779 = vpop.f32.mrb[0].mxu0
        %v780 = vpop.f32.mrb[0].mxu0
        %v781 = vadd.f32 0.0, %v780
        %v782 = vpop.f32.mrb[0].mxu0
        %783 = vdwg.mxu0
        %784 = vst [vmem:[%s323] sm:$0xff] %v778
        %785 = vst [vmem:[%s323 + $0x8] sm:$0x3] %v781
        %s786 = sand.u32 %s137, 1
        %s787 = scalar_lea.sflag [#allocation4], %s786
        %s788 = sand.u32 %s137, 1
        %s789 = smul.addr %s788, 16
        %s790 = scalar_lea.vmem [#allocation3], %s789
        // Predicated region
        $region82: #{net_forward.1} parent=76 // pred_check
          %p791 = pneg %p147
        $region83: #{net_forward.1} parent=76 // pred_check_branch
          %793 = sbr.rel (%p791) target = $region85
        $region84: #{net_forward.1} parent=76 // pred_region
          %s795 = ssub.s32 256, 256
          %796 = vsyncadd %s787, %s795
          %s797 = smul.addr %s19, 128
          %s798 = scalar_lea.hbm %s5, %s797
          %s799 = sshll.u32 %s790, 4
          %s800 = int_to_ptr.vmem [resolvable:$true] %s799
          %805 = dma.vmem_to_hbm [thread:$0]  %s800, 256, %s798, %s787, 128, 256, 8
        $region85: #{net_forward.1} parent=76 // pred_fallthru
          _
      $region77: #{net_forward.1} parent=5 // pred_fallthru
        _
      %p806 = scmp.le.s32.totalorder 2, %s14
      // Predicated region
      $region86: #{net_forward.1} parent=5 // pred_check
        %p807 = pneg %p806
      $region87: #{net_forward.1} parent=5 // pred_check_branch
        %809 = sbr.rel (%p807) target = $region89
      $region88: #{net_forward.1} parent=5 // pred_region
        %s810 = ssub.s32 %s14, 2
        // Predicated region
        $region90: #{net_forward.1} parent=88 // pred_check
          %p811 = pneg %p153
        $region91: #{net_forward.1} parent=88 // pred_check_branch
          %813 = sbr.rel (%p811) target = $region93
        $region92: #{net_forward.1} parent=88 // pred_region
          %s814 = sand.u32 %s138, 1
          %s815 = scalar_lea.sflag [#allocation4], %s814
          %s816 = sand.u32 %s138, 1
          %s817 = smul.addr %s816, 16
          %s818 = scalar_lea.vmem [#allocation3], %s817
          %819 = dma.done %s815, 256
        $region93: #{net_forward.1} parent=88 // pred_fallthru
          _
      $region89: #{net_forward.1} parent=5 // pred_fallthru
        _
    $region6: #{net_forward.1} parent=1 // loop_footer
      %s18 = sadd.s32 1, %s14
    $region7: #{net_forward.1} parent=1 // loop_footer_branch
      %13 = sbr.rel target = $region3
    $region8: #{net_forward.1} parent=1 // loop_exit
      _
    %820 = vsyncpa [#allocation4], 1
    %s821 = scalar_lea.sflag [#allocation4], 1
    %822 = vsyncpa %s821, 1

</llo_original>
